<compile_context>
chip_gen: v7x
topology: tpu7x:2x2x1
jax: 0.10.0
libtpu: 0.0.40
codegen_flags: <defaults>
</compile_context>

<pallas_src>
import math
from functools import partial

import jax
import jax.numpy as jnp
from jax import lax
from jax.experimental import pallas as pl
from jax.experimental.pallas import tpu as pltpu


# ----------------------------------------------------------------------------
# helpers
# ----------------------------------------------------------------------------
def _round_up(x, m):
    return (x + m - 1) // m * m


def _vmem_params(block_bytes, dims):
    limit = int(min(96 * 1024 * 1024, max(32 * 1024 * 1024, 2 * block_bytes)))
    return pltpu.CompilerParams(dimension_semantics=dims, vmem_limit_bytes=limit)


# ----------------------------------------------------------------------------
# Linear (y = x @ w + b), tiled M/N/K with f32 accumulator
# ----------------------------------------------------------------------------
def _linear_kernel(x_ref, w_ref, b_ref, o_ref, acc_ref, *, mxu_dtype):
    @pl.when(pl.program_id(2) == 0)
    def _():
        acc_ref[...] = jnp.zeros_like(acc_ref)

    x = x_ref[...]
    w = w_ref[...]
    if mxu_dtype is not None:
        x = x.astype(mxu_dtype)
        w = w.astype(mxu_dtype)
    acc_ref[...] += jnp.dot(x, w, preferred_element_type=jnp.float32)

    @pl.when(pl.program_id(2) == pl.num_programs(2) - 1)
    def _():
        o_ref[...] = (acc_ref[...] + b_ref[...].astype(jnp.float32)).astype(o_ref.dtype)


def pallas_linear(x, w, b, *, tile_m=256, tile_n=256, tile_k=512, mxu_dtype=None):
    M, K = x.shape
    N = w.shape[1]

    tm = min(tile_m, _round_up(M, 8))
    Mp = _round_up(M, tm)
    if Mp != M:
        x = jnp.pad(x, ((0, Mp - M), (0, 0)))

    tn = tile_n if (N > tile_n and N % tile_n == 0) else N
    tk = tile_k if (K > 2 * tile_k and K % tile_k == 0) else K

    b2 = b.reshape(1, N)
    itm = jnp.dtype(x.dtype).itemsize
    blk_bytes = 2 * itm * (tm * tk + tk * tn + tn + tm * tn) + 4 * tm * tn

    y = pl.pallas_call(
        partial(_linear_kernel, mxu_dtype=mxu_dtype),
        out_shape=jax.ShapeDtypeStruct((Mp, N), x.dtype),
        grid=(Mp // tm, N // tn, K // tk),
        in_specs=[
            pl.BlockSpec((tm, tk), lambda i, j, k: (i, k)),
            pl.BlockSpec((tk, tn), lambda i, j, k: (k, j)),
            pl.BlockSpec((1, tn), lambda i, j, k: (0, j)),
        ],
        out_specs=pl.BlockSpec((tm, tn), lambda i, j, k: (i, j)),
        scratch_shapes=[pltpu.VMEM((tm, tn), jnp.float32)],
        compiler_params=_vmem_params(blk_bytes, ("parallel", "parallel", "arbitrary")),
    )(x, w, b2)
    return y[:M] if Mp != M else y


# ----------------------------------------------------------------------------
# Multi-head attention: heads packed per grid step, online softmax over KV tiles
# ----------------------------------------------------------------------------
def _attn_kernel(*refs, scale, H, dk, dv, out_attn, mxu_dtype):
    if out_attn:
        q_ref, k_ref, v_ref, o_ref, a_ref, m_sc, l_sc, acc_sc = refs
    else:
        q_ref, k_ref, v_ref, o_ref, m_sc, l_sc, acc_sc = refs
        a_ref = None

    kv = pl.program_id(2)

    @pl.when(kv == 0)
    def _():
        m_sc[...] = jnp.full_like(m_sc, -jnp.inf)
        l_sc[...] = jnp.zeros_like(l_sc)
        acc_sc[...] = jnp.zeros_like(acc_sc)

    cdt = mxu_dtype if mxu_dtype is not None else q_ref.dtype
    qf = q_ref[0]                      # (tl, H*dk)
    kf = k_ref[0]                      # (ts, H*dk)
    vf = v_ref[0].astype(cdt)          # (ts, H*dv)

    for h in range(H):
        # Fold the softmax scale into q (L*dk VALU ops instead of L*S).
        q_h = (qf[:, h * dk:(h + 1) * dk].astype(jnp.float32) * scale).astype(cdt)
        k_h = kf[:, h * dk:(h + 1) * dk].astype(cdt)
        v_h = vf[:, h * dv:(h + 1) * dv]

        # (tl, ts) scores: contract the feature axis directly, no k.T transpose.
        s = lax.dot_general(q_h, k_h, (((1,), (1,)), ((), ())),
                            preferred_element_type=jnp.float32)

        m_prev = m_sc[h]
        l_prev = l_sc[h]
        m_new = jnp.maximum(m_prev, jnp.max(s, axis=-1, keepdims=True))
        alpha = jnp.exp(m_prev - m_new)
        p = jnp.exp(s - m_new)
        l_new = alpha * l_prev + jnp.sum(p, axis=-1, keepdims=True)

        pv = jnp.dot(p.astype(cdt), v_h, preferred_element_type=jnp.float32)
        acc_sc[h] = alpha * acc_sc[h] + pv
        m_sc[h] = m_new
        l_sc[h] = l_new

        if out_attn:
            # out_attn forces a single KV tile, so p / l_new is the full softmax.
            a_ref[0, h] = (p * pl.reciprocal(l_new, approx=True)).astype(a_ref.dtype)

    @pl.when(kv == pl.num_programs(2) - 1)
    def _():
        cols = [acc_sc[h] * pl.reciprocal(l_sc[h], approx=True) for h in range(H)]
        # Single lane-dense store of (tl, H*dv).
        o_ref[0] = jnp.concatenate(cols, axis=-1).astype(o_ref.dtype)


def pallas_attention(q_arr, k_arr, v_arr, *, B, L, S, H, dk, dv, scale,
                     k_off=0, v_off=0, output_attention=True,
                     mxu_dtype=None, kv_tile=512, l_tile=256):
    Hdk, Hdv = H * dk, H * dv
    out_dtype = q_arr.dtype

    tl = l_tile if (L > l_tile and L % l_tile == 0) else L
    if output_attention:
        ts = S                                        # single KV tile (full softmax)
    else:
        ts = kv_tile if (S > kv_tile and S % kv_tile == 0) else S
    n_l, n_kv = L // tl, S // ts

    itm = jnp.dtype(out_dtype).itemsize
    blk = 2 * itm * (tl * Hdk + ts * Hdk + ts * Hdv + tl * Hdv)
    blk += 4 * (2 * H * tl + H * tl * dv)             # scratch m/l/acc
    if output_attention:
        blk += 2 * 4 * H * tl * S

    in_specs = [
        pl.BlockSpec((1, tl, Hdk), lambda b, l, kv: (b, l, 0)),
        pl.BlockSpec((1, ts, Hdk), lambda b, l, kv: (b, kv, k_off)),
        pl.BlockSpec((1, ts, Hdv), lambda b, l, kv: (b, kv, v_off)),
    ]
    o_spec = pl.BlockSpec((1, tl, Hdv), lambda b, l, kv: (b, l, 0))
    if output_attention:
        out_shape = (jax.ShapeDtypeStruct((B, L, Hdv), out_dtype),
                     jax.ShapeDtypeStruct((B, H, L, S), jnp.float32))
        out_specs = (o_spec,
                     pl.BlockSpec((1, H, tl, S), lambda b, l, kv: (b, 0, l, 0)))
    else:
        out_shape = jax.ShapeDtypeStruct((B, L, Hdv), out_dtype)
        out_specs = o_spec

    scratch = [pltpu.VMEM((H, tl, 1), jnp.float32),
               pltpu.VMEM((H, tl, 1), jnp.float32),
               pltpu.VMEM((H, tl, dv), jnp.float32)]

    res = pl.pallas_call(
        partial(_attn_kernel, scale=scale, H=H, dk=dk, dv=dv,
                out_attn=output_attention, mxu_dtype=mxu_dtype),
        out_shape=out_shape,
        grid=(B, n_l, n_kv),
        in_specs=in_specs,
        out_specs=out_specs,
        scratch_shapes=scratch,
        compiler_params=_vmem_params(blk, ("parallel", "parallel", "arbitrary")),
    )(q_arr, k_arr, v_arr)

    if output_attention:
        return res
    return res, None


# ----------------------------------------------------------------------------
# AttentionLayer forward
# ----------------------------------------------------------------------------
def init_attention_layer_params(key, d_model, n_heads, d_keys=None, d_values=None):
    d_keys = d_keys or d_model // n_heads
    d_values = d_values or d_model // n_heads

    def linear_init(k, fan_in, fan_out):
        kw, kb = jax.random.split(k)
        bound = 1.0 / math.sqrt(fan_in)
        w = jax.random.uniform(kw, (fan_in, fan_out), jnp.float32, -bound, bound)
        b = jax.random.uniform(kb, (fan_out,), jnp.float32, -bound, bound)
        return w, b

    k1, k2, k3, k4 = jax.random.split(key, 4)
    return {
        "wq": linear_init(k1, d_model, d_keys * n_heads),
        "wk": linear_init(k2, d_model, d_keys * n_heads),
        "wv": linear_init(k3, d_model, d_values * n_heads),
        "wo": linear_init(k4, d_values * n_heads, d_model),
    }


def attention_layer_forward(params, queries, keys, values, n_heads,
                            attn_mask=None, tau=None, delta=None,
                            output_attention=True, mxu_dtype=None, kv_tile=512):
    # TODO(synk): attn_mask / causal masking not implemented (FullAttention(mask_flag=False) only).
    B, L, d_model = queries.shape
    _, S, _ = keys.shape
    H = n_heads

    wq, bq = params["wq"]
    wk, bk = params["wk"]
    wv, bv = params["wv"]
    wo, bo = params["wo"]
    d_k = wq.shape[1] // H
    d_v = wv.shape[1] // H
    scale = 1.0 / math.sqrt(d_k)

    self_attn = (queries is keys) and (keys is values) and (d_k == d_v)

    if self_attn:
        # Fused Q/K/V projection: one GEMM, activations read from HBM once.
        w_qkv = jnp.concatenate([wq, wk, wv], axis=1)
        b_qkv = jnp.concatenate([bq, bk, bv], axis=0)
        qkv = pallas_linear(queries.reshape(B * L, d_model), w_qkv, b_qkv,
                            mxu_dtype=mxu_dtype).reshape(B, L, 3 * H * d_k)
        if (H * d_k) % 128 == 0:
            # Zero-copy: attention BlockSpecs slice q/k/v straight out of qkv.
            q_arr = k_arr = v_arr = qkv
            k_off, v_off = 1, 2
        else:
            q_arr = qkv[..., :H * d_k]
            k_arr = qkv[..., H * d_k:2 * H * d_k]
            v_arr = qkv[..., 2 * H * d_k:]
            k_off = v_off = 0
    else:
        q_arr = pallas_linear(queries.reshape(B * L, d_model), wq, bq,
                              mxu_dtype=mxu_dtype).reshape(B, L, H * d_k)
        k_arr = pallas_linear(keys.reshape(B * S, d_model), wk, bk,
                              mxu_dtype=mxu_dtype).reshape(B, S, H * d_k)
        v_arr = pallas_linear(values.reshape(B * S, d_model), wv, bv,
                              mxu_dtype=mxu_dtype).reshape(B, S, H * d_v)
        k_off = v_off = 0

    out, attn = pallas_attention(
        q_arr, k_arr, v_arr, B=B, L=L, S=S, H=H, dk=d_k, dv=d_v, scale=scale,
        k_off=k_off, v_off=v_off, output_attention=output_attention,
        mxu_dtype=mxu_dtype, kv_tile=kv_tile)

    # out is already (B, L, H*d_v): free reshape, no transposes.
    y = pallas_linear(out.reshape(B * L, H * d_v), wo, bo,
                      mxu_dtype=mxu_dtype).reshape(B, L, d_model)
    return y, attn


# ----------------------------------------------------------------------------
# Pure-JAX reference
# ----------------------------------------------------------------------------
def reference_forward(params, queries, keys, values, n_heads):
    B, L, d_model = queries.shape
    _, S, _ = keys.shape
    H = n_heads
    wq, bq = params["wq"]
    wk, bk = params["wk"]
    wv, bv = params["wv"]
    wo, bo = params["wo"]
    d_k = wq.shape[1] // H
    d_v = wv.shape[1] // H
    q = (queries @ wq + bq).reshape(B, L, H, d_k)
    k = (keys @ wk + bk).reshape(B, S, H, d_k)
    v = (values @ wv + bv).reshape(B, S, H, d_v)
    scale = 1.0 / math.sqrt(d_k)
    scores = jnp.einsum("blhe,bshe->bhls", q, k) * scale
    a = jax.nn.softmax(scores, axis=-1)
    o = jnp.einsum("bhls,bshd->blhd", a, v).reshape(B, L, H * d_v)
    return o @ wo + bo, a


if __name__ == "__main__":
    B, L, S, d_model, n_heads = 2, 8, 16, 32, 4

    key = jax.random.PRNGKey(0)
    kx, kq, kk, kv, kp = jax.random.split(key, 5)
    x = jax.random.normal(kx, (B, L, d_model), jnp.float32)
    q_in = jax.random.normal(kq, (B, L, d_model), jnp.float32)
    k_in = jax.random.normal(kk, (B, S, d_model), jnp.float32)
    v_in = jax.random.normal(kv, (B, S, d_model), jnp.float32)

    params = init_attention_layer_params(kp, d_model, n_heads)

    # 1) self-attention (fused QKV projection), attention weights returned
    y1, a1 = attention_layer_forward(params, x, x, x, n_heads)
    jax.block_until_ready((y1, a1))
    y1_ref, a1_ref = reference_forward(params, x, x, x, n_heads)
    assert y1.shape == (B, L, d_model) and a1.shape == (B, n_heads, L, L)
    assert jnp.allclose(y1, y1_ref, atol=2e-3, rtol=2e-3)
    assert jnp.allclose(a1, a1_ref, atol=2e-3, rtol=2e-3)

    # 2) cross-attention (separate projections), attention weights returned
    y2, a2 = attention_layer_forward(params, q_in, k_in, v_in, n_heads)
    jax.block_until_ready((y2, a2))
    y2_ref, a2_ref = reference_forward(params, q_in, k_in, v_in, n_heads)
    assert jnp.allclose(y2, y2_ref, atol=2e-3, rtol=2e-3)
    assert jnp.allclose(a2, a2_ref, atol=2e-3, rtol=2e-3)

    # 3) flash-style KV-tiled online softmax (no attention weights), 2 KV tiles
    y3, a3 = attention_layer_forward(params, q_in, k_in, v_in, n_heads,
                                     output_attention=False, kv_tile=8)
    jax.block_until_ready(y3)
    assert a3 is None
    assert jnp.allclose(y3, y2_ref, atol=2e-3, rtol=2e-3)

    # 4) bf16 MXU operands with f32 accumulation (self-attention, no attn weights)
    y4, _ = attention_layer_forward(params, x, x, x, n_heads,
                                    output_attention=False, mxu_dtype=jnp.bfloat16)
    jax.block_until_ready(y4)
    assert jnp.allclose(y4, y1_ref, atol=1e-1, rtol=1e-1)

    print("KERNEL_OK")
</pallas_src>

<mosaic_0001>
module attributes {stable_mosaic.version = 11 : i64} {
  func.func @_linear_kernel(%arg0: i32, %arg1: i32, %arg2: i32, %arg3: memref<16x32xf32, #tpu.memory_space<vmem>>, %arg4: memref<32x96xf32, #tpu.memory_space<vmem>>, %arg5: memref<1x96xf32, #tpu.memory_space<vmem>>, %arg6: memref<16x96xf32, #tpu.memory_space<vmem>>, %arg7: memref<16x96xf32, #tpu.memory_space<vmem>>) attributes {dimension_semantics = [#tpu.dimension_semantics<parallel>, #tpu.dimension_semantics<parallel>, #tpu.dimension_semantics<arbitrary>], iteration_bounds = array<i64: 1, 1, 1>, scalar_prefetch = 0 : i64, scratch_operands = 1 : i64, tpu.core_type = #tpu.core_type<tc>, window_params = [{transform_indices = @transform_0, window_bounds = array<i64: 16, 32>}, {transform_indices = @transform_1, window_bounds = array<i64: 32, 96>}, {transform_indices = @transform_2, window_bounds = array<i64: 1, 96>}, {transform_indices = @transform_3, window_bounds = array<i64: 16, 96>}]} {
    %c0_i32 = arith.constant 0 : i32
    %0 = arith.cmpi eq, %arg2, %c0_i32 : i32
    %1 = arith.extui %0 : i1 to i32
    %c0_i32_0 = arith.constant 0 : i32
    %2 = arith.cmpi ne, %1, %c0_i32_0 : i32
    scf.if %2 {
      %cst_10 = arith.constant 0.000000e+00 : f32
      %12 = vector.broadcast %cst_10 : f32 to vector<16x96xf32>
      %c0_11 = arith.constant 0 : index
      %c0_12 = arith.constant 0 : index
      %13 = vector.load %arg7[%c0_11, %c0_12] : memref<16x96xf32, #tpu.memory_space<vmem>>, vector<16x96xf32>
      tpu.vector_store %arg7[%c0_11, %c0_12], %12 {strides = array<i32>} : memref<16x96xf32, #tpu.memory_space<vmem>>, vector<16x96xf32>,
    } else {
    }
    %c0 = arith.constant 0 : index
    %c0_1 = arith.constant 0 : index
    %3 = vector.load %arg3[%c0, %c0_1] : memref<16x32xf32, #tpu.memory_space<vmem>>, vector<16x32xf32>
    %c0_2 = arith.constant 0 : index
    %c0_3 = arith.constant 0 : index
    %4 = vector.load %arg4[%c0_2, %c0_3] : memref<32x96xf32, #tpu.memory_space<vmem>>, vector<32x96xf32>
    %c0_4 = arith.constant 0 : index
    %c0_5 = arith.constant 0 : index
    %5 = vector.load %arg7[%c0_4, %c0_5] : memref<16x96xf32, #tpu.memory_space<vmem>>, vector<16x96xf32>
    %cst = arith.constant dense<0.000000e+00> : vector<16x96xf32>
    %6 = tpu.matmul %3, %4, %cst {dimension_numbers = #tpu.dot_dimension_numbers<[1], [0], [0], [1], [0, 0, 1, 1], [], []>} : vector<16x32xf32>, vector<32x96xf32>, vector<16x96xf32> -> vector<16x96xf32>
    %7 = arith.addf %5, %6 : vector<16x96xf32>
    %c0_6 = arith.constant 0 : index
    %c0_7 = arith.constant 0 : index
    %8 = vector.load %arg7[%c0_6, %c0_7] : memref<16x96xf32, #tpu.memory_space<vmem>>, vector<16x96xf32>
    tpu.vector_store %arg7[%c0_6, %c0_7], %7 {strides = array<i32>} : memref<16x96xf32, #tpu.memory_space<vmem>>, vector<16x96xf32>,
    %c0_i32_8 = arith.constant 0 : i32
    %9 = arith.cmpi eq, %arg2, %c0_i32_8 : i32
    %10 = arith.extui %9 : i1 to i32
    %c0_i32_9 = arith.constant 0 : i32
    %11 = arith.cmpi ne, %10, %c0_i32_9 : i32
    scf.if %11 {
      %c0_10 = arith.constant 0 : index
      %c0_11 = arith.constant 0 : index
      %12 = vector.load %arg7[%c0_10, %c0_11] : memref<16x96xf32, #tpu.memory_space<vmem>>, vector<16x96xf32>
      %c0_12 = arith.constant 0 : index
      %c0_13 = arith.constant 0 : index
      %13 = vector.load %arg5[%c0_12, %c0_13] : memref<1x96xf32, #tpu.memory_space<vmem>>, vector<1x96xf32>
      %14 = vector.broadcast %13 : vector<1x96xf32> to vector<16x96xf32>
      %15 = arith.addf %12, %14 : vector<16x96xf32>
      %c0_14 = arith.constant 0 : index
      %c0_15 = arith.constant 0 : index
      %16 = vector.load %arg6[%c0_14, %c0_15] : memref<16x96xf32, #tpu.memory_space<vmem>>, vector<16x96xf32>
      tpu.vector_store %arg6[%c0_14, %c0_15], %15 {strides = array<i32>} : memref<16x96xf32, #tpu.memory_space<vmem>>, vector<16x96xf32>,
    } else {
    }
    return
  }
  func.func @transform_0(%arg0: i32, %arg1: i32, %arg2: i32) -> (i32, i32) {
    %c0_i32 = arith.constant 0 : i32
    return %arg0, %arg2 : i32, i32
  }
  func.func @transform_1(%arg0: i32, %arg1: i32, %arg2: i32) -> (i32, i32) {
    %c0_i32 = arith.constant 0 : i32
    return %arg2, %arg1 : i32, i32
  }
  func.func @transform_2(%arg0: i32, %arg1: i32, %arg2: i32) -> (i32, i32) {
    %c0_i32 = arith.constant 0 : i32
    %c0_i32_0 = arith.constant 0 : i32
    return %c0_i32, %arg1 : i32, i32
  }
  func.func @transform_3(%arg0: i32, %arg1: i32, %arg2: i32) -> (i32, i32) {
    %c0_i32 = arith.constant 0 : i32
    return %arg0, %arg1 : i32, i32
  }
}

</mosaic_0001>

<llo_original>
// kernel: tpu_custom_call.1
$region0: #{tpu_custom_call.1}
  #allocation0 [shape = 'u32[]', space=smem, size = 0x4, offset = 0x4, fixed_abs, tag = 'smem constant byte address 0x4 - core index']
  #allocation1 [shape = 'u32[144,128]{1,0:T(1,128)}', space=vmem, size = 0x12000, scoped, tag = 'internal scratch']
  #allocation2 [shape = 'f32[16,96]{1,0:T(8,128)}', space=vmem, size = 0x2000, scoped, tag = 'scratch operand']
  %s0 = inlined_call_operand.hbm [shape: f32[16,32], index: 0, kind: input, shape index: {}]
  %s1 = inlined_call_operand.hbm [shape: f32[32,96], index: 1, kind: input, shape index: {}]
  %s2 = inlined_call_operand.vmem [shape: f32[1,96], index: 2, kind: input, shape index: {}]
  %s3 = inlined_call_operand.hbm [shape: f32[16,96], index: 3, kind: output, shape index: {}]
  %s4 = sld [smem:[#allocation0]]
  $region38: #{tpu_custom_call.1} parent=0
    _
  %s6 = ssub.s32 1, %s4
  %s7 = scalar_select 0, %s6, %s4
  $region1: #{tpu_custom_call.1} parent=0
    #allocation3 [shape = 'u8[8192]{0}', space=vmem, size = 0x2000, scoped, tag = 'input window, operand 0, single buffered']
    #allocation4 [shape = 's32[1]{0}', space=sflag, size = 0x4, scoped, tag = 'scoped memory for tpu_custom_call.1']
    #allocation5 [shape = 's32[1]{0}', space=sflag, size = 0x4, scoped, tag = 'scoped memory for tpu_custom_call.1']
    #allocation6 [shape = 'u8[16384]{0}', space=vmem, size = 0x4000, scoped, tag = 'input window, operand 1, single buffered']
    #allocation7 [shape = 's32[1]{0}', space=sflag, size = 0x4, scoped, tag = 'scoped memory for tpu_custom_call.1']
    #allocation8 [shape = 'u8[8192]{0}', space=vmem, size = 0x2000, scoped, tag = 'output window, operand 0, single buffered']
    %8 = vsyncpa [#allocation4], 0
    %9 = vsyncpa [#allocation7], 0
    %10 = vsyncpa [#allocation5], 0
    // Predicated region
    $region2: #{tpu_custom_call.1} parent=1 // pred_check
      _
    $region3: #{tpu_custom_call.1} parent=1 // pred_check_branch
      %12 = sbr.rel (0) target = $region5
    $region4: #{tpu_custom_call.1} parent=1 // pred_region
      %s14 = ssub.s32 256, 256
      %15 = vsyncadd [#allocation4], %s14
      %s16 = sshll.u32 [#allocation3], 4
      %s17 = int_to_ptr.vmem [resolvable:$true] %s16
      %22 = dma.hbm_to_vmem [thread:$0]  %s0, 256, %s17, [#allocation4], 128, 128, 8
    $region5: #{tpu_custom_call.1} parent=1 // pred_fallthru
      _
    // Predicated region
    $region6: #{tpu_custom_call.1} parent=1 // pred_check
      _
    $region7: #{tpu_custom_call.1} parent=1 // pred_check_branch
      %24 = sbr.rel (0) target = $region9
    $region8: #{tpu_custom_call.1} parent=1 // pred_region
      %s26 = ssub.s32 512, 512
      %27 = vsyncadd [#allocation7], %s26
      %s28 = sshll.u32 [#allocation6], 4
      %s29 = int_to_ptr.vmem [resolvable:$true] %s28
      %34 = dma.hbm_to_vmem [thread:$0]  %s1, 512, %s29, [#allocation7], 128, 128, 8
    $region9: #{tpu_custom_call.1} parent=1 // pred_fallthru
      _
    // Predicated region
    $region10: #{tpu_custom_call.1} parent=1 // pred_check
      _
    $region11: #{tpu_custom_call.1} parent=1 // pred_check_branch
      %36 = sbr.rel (0) target = $region13
    $region12: #{tpu_custom_call.1} parent=1 // pred_region
      _
    $region13: #{tpu_custom_call.1} parent=1 // pred_fallthru
      _
    // Predicated region
    $region14: #{tpu_custom_call.1} parent=1 // pred_check
      _
    $region15: #{tpu_custom_call.1} parent=1 // pred_check_branch
      %38 = sbr.rel (0) target = $region17
    $region16: #{tpu_custom_call.1} parent=1 // pred_region
      %39 = dma.done [#allocation4], 256
    $region17: #{tpu_custom_call.1} parent=1 // pred_fallthru
      _
    // Predicated region
    $region18: #{tpu_custom_call.1} parent=1 // pred_check
      _
    $region19: #{tpu_custom_call.1} parent=1 // pred_check_branch
      %41 = sbr.rel (0) target = $region21
    $region20: #{tpu_custom_call.1} parent=1 // pred_region
      %42 = dma.done [#allocation7], 512
    $region21: #{tpu_custom_call.1} parent=1 // pred_fallthru
      _
    %p43 = scmp.eq.s32.totalorder 0, 0
    // Predicated region
    $region22: #{tpu_custom_call.1} parent=1 // pred_check
      %p44 = pneg %p43
    $region23: #{tpu_custom_call.1} parent=1 // pred_check_branch
      %46 = sbr.rel (%p44) target = $region25
    $region24: #{tpu_custom_call.1} parent=1 // pred_region
      %vm47 = vcmask 785408
      %48 = vst.msk [vmem:[#allocation2] sm:$0xff] %vm47, 0.0
      %49 = vst.msk [vmem:[#allocation2 + $0x8] sm:$0xff] %vm47, 0.0
    $region25: #{tpu_custom_call.1} parent=1 // pred_fallthru
      _
    %v50 = vld [vmem:[#allocation3] sm:$0xff]
    %v51 = vld [vmem:[#allocation3 + $0x8] sm:$0xff]
    %v52 = vld [vmem:[#allocation6] sm:$0xff]
    %v53 = vld [vmem:[#allocation6 + $0x8] sm:$0xff]
    %v54 = vld [vmem:[#allocation6 + $0x10] sm:$0xff]
    %v55 = vld [vmem:[#allocation6 + $0x18] sm:$0xff]
    %v56 = vld [vmem:[#allocation2] sm:$0xff]
    %v57 = vld [vmem:[#allocation2 + $0x8] sm:$0xff]
    %vm58 = vcmask 261120
    %v60 = vsel %vm58, %v50, 0
    %v63 = vsel %vm58, %v51, 0
    %65 = vmatprep.subr.mxu0 0.0
    %66 = vmatpush1.msra.mxu0 %v52
    %67 = vmatprep.subr.mxu0 0.0
    %68 = vmatpush1.msra.mxu0 %v53
    %69 = vmatprep.subr.mxu0 0.0
    %70 = vmatpush1.msra.mxu0 %v54
    %71 = vmatprep.subr.mxu0 0.0
    %72 = vmatpush1.msra.mxu0 %v55
    %73 = vmatprep.subr.mxu0 0.0
    %74 = vmatpush1.msra.mxu0 0.0
    %75 = vmatprep.subr.mxu0 0.0
    %76 = vmatpush1.msra.mxu0 0.0
    %77 = vmatprep.subr.mxu0 0.0
    %78 = vmatpush1.msra.mxu0 0.0
    %79 = vmatprep.subr.mxu0 0.0
    %80 = vmatpush1.msra.mxu0 0.0
    %81 = vmatprep.subr.mxu0 0.0
    %82 = vmatpush1.msra.mxu0 0.0
    %83 = vmatprep.subr.mxu0 0.0
    %84 = vmatpush1.msra.mxu0 0.0
    %85 = vmatprep.subr.mxu0 0.0
    %86 = vmatpush1.msra.mxu0 0.0
    %87 = vmatprep.subr.mxu0 0.0
    %88 = vmatpush1.msra.mxu0 0.0
    %89 = vmatprep.subr.mxu0 0.0
    %90 = vmatpush1.msra.mxu0 0.0
    %91 = vmatprep.subr.mxu0 0.0
    %92 = vmatpush1.msra.mxu0 0.0
    %93 = vmatprep.subr.mxu0 0.0
    %94 = vmatpush1.msra.mxu0 0.0
    %95 = vmatprep.subr.mxu0 0.0
    %96 = vmatpush1.msra.mxu0 0.0
    %97 = vmatprep.subr.mxu0 0.0
    %98 = vmatpush1.msra.mxu0 0.0
    %99 = vmatprep.subr.mxu0 0.0
    %100 = vmatpush1.msra.mxu0 0.0
    %101 = vmatprep.subr.mxu0 0.0
    %102 = vmatpush1.msra.mxu0 0.0
    %103 = vmatprep.subr.mxu0 0.0
    %104 = vmatpush1.msra.mxu0 0.0
    %105 = vmatprep.subr.mxu0 0.0
    %106 = vmatpush1.msra.mxu0 0.0
    %107 = vmatprep.subr.mxu0 0.0
    %108 = vmatpush1.msra.mxu0 0.0
    %109 = vmatprep.subr.mxu0 0.0
    %110 = vmatpush1.msra.mxu0 0.0
    %111 = vmatprep.subr.mxu0 0.0
    %112 = vmatpush1.msra.mxu0 0.0
    %113 = vmatprep.subr.mxu0 0.0
    %114 = vmatpush1.msra.mxu0 0.0
    %115 = vmatprep.subr.mxu0 0.0
    %116 = vmatpush1.msra.mxu0 0.0
    %117 = vmatprep.subr.mxu0 0.0
    %118 = vmatpush1.msra.mxu0 0.0
    %119 = vmatprep.subr.mxu0 0.0
    %120 = vmatpush1.msra.mxu0 0.0
    %121 = vmatprep.subr.mxu0 0.0
    %122 = vmatpush1.msra.mxu0 0.0
    %123 = vmatprep.subr.mxu0 0.0
    %124 = vmatpush1.msra.mxu0 0.0
    %125 = vmatprep.subr.mxu0 0.0
    %126 = vmatpush1.msra.mxu0 0.0
    %127 = vmatprep.subr.mxu0 0.0
    %128 = vmatpush1.msra.mxu0 0.0
    %129 = vmatprep.mubr.f32.mxu0 0.0
    %130 = vmatmul.mubr.f32.gmra.mrb[0].mxu0 %v60
    %v131 = vpop.f32.mrb[0].mxu0
    %v132 = vadd.f32 0.0, %v131
    %v133 = vpop.f32.mrb[0].mxu0
    %134 = vmatprep.mubr.f32.mxu0 0.0
    %135 = vmatmul.mubr.f32.gmra.mrb[0].mxu0 %v63
    %v136 = vpop.f32.mrb[0].mxu0
    %v137 = vadd.f32 0.0, %v136
    %v138 = vpop.f32.mrb[0].mxu0
    %139 = vdwg.mxu0
    %v140 = vadd.f32 %v56, %v132
    %v141 = vadd.f32 %v57, %v137
    %vm142 = vcmask 785408
    %143 = vst.msk [vmem:[#allocation2] sm:$0xff] %vm142, %v140
    %144 = vst.msk [vmem:[#allocation2 + $0x8] sm:$0xff] %vm142, %v141
    // Predicated region
    $region26: #{tpu_custom_call.1} parent=1 // pred_check
      %p145 = pneg %p43
    $region27: #{tpu_custom_call.1} parent=1 // pred_check_branch
      %147 = sbr.rel (%p145) target = $region29
    $region28: #{tpu_custom_call.1} parent=1 // pred_region
      %v148 = vld [vmem:[#allocation2] sm:$0xff]
      %v149 = vld [vmem:[#allocation2 + $0x8] sm:$0xff]
      %v150 = vld [vmem:[%s2] sm:$0x1]
      %v152 = vlaneseq
      %v153 = vshrl.u32 %v152, 7
      %v154 = vsub.s32 0, %v153
      %v155 = vrot.slane %v150, %v154
      %v157 = vadd.f32 %v148, %v155
      %v158 = vadd.f32 %v149, %v155
      %159 = vst.msk [vmem:[#allocation8] sm:$0xff] %vm142, %v157
      %160 = vst.msk [vmem:[#allocation8 + $0x8] sm:$0xff] %vm142, %v158
    $region29: #{tpu_custom_call.1} parent=1 // pred_fallthru
      _
    // Predicated region
    $region30: #{tpu_custom_call.1} parent=1 // pred_check
      _
    $region31: #{tpu_custom_call.1} parent=1 // pred_check_branch
      %162 = sbr.rel (0) target = $region33
    $region32: #{tpu_custom_call.1} parent=1 // pred_region
      %s164 = ssub.s32 256, 256
      %165 = vsyncadd [#allocation5], %s164
      %s166 = sshll.u32 [#allocation8], 4
      %s167 = int_to_ptr.vmem [resolvable:$true] %s166
      %172 = dma.vmem_to_hbm [thread:$0]  %s167, 256, %s3, [#allocation5], 128, 128, 8
    $region33: #{tpu_custom_call.1} parent=1 // pred_fallthru
      _
    // Predicated region
    $region34: #{tpu_custom_call.1} parent=1 // pred_check
      _
    $region35: #{tpu_custom_call.1} parent=1 // pred_check_branch
      %174 = sbr.rel (0) target = $region37
    $region36: #{tpu_custom_call.1} parent=1 // pred_region
      %175 = dma.done [#allocation5], 256
    $region37: #{tpu_custom_call.1} parent=1 // pred_fallthru
      _
    %176 = vsyncpa [#allocation4], 1
    %177 = vsyncpa [#allocation7], 1
    %178 = vsyncpa [#allocation5], 1

</llo_original>
